<compile_context>
chip_gen: v7x
topology: tpu7x:2x2x1
jax: 0.10.0
libtpu: 0.0.40
codegen_flags: <defaults>
</compile_context>

<pallas_src>
import functools

import jax
import jax.numpy as jnp
from jax.experimental import pallas as pl
from jax.experimental.pallas import tpu as pltpu

LANE = 128
SUBLANE = 8
MAX_TILE = 512                    # amortizes per-grid-step overhead (review items 1/6)
VMEM_LIMIT = 48 * 1024 * 1024     # safe on v7x (64 MiB physical) and v5e/v6e


def _round_up(x, m):
    return (x + m - 1) // m * m


def _pick_tile(dim_pad, max_tile=MAX_TILE):
    """Largest multiple of LANE that divides dim_pad and is <= max_tile."""
    t = min(dim_pad, max_tile)
    while dim_pad % t:
        t -= LANE
    return t


# --------------------------- kernel 1: X @ W_rel (bf16) ---------------------------

def _xw_kernel(x_ref, wrel_ref, o_ref):
    o_ref[...] = jnp.dot(x_ref[...], wrel_ref[...],
                         preferred_element_type=jnp.float32).astype(o_ref.dtype)


def _node_linear(x_bf16, w_rel_bf16):
    n, f = x_bf16.shape
    h = w_rel_bf16.shape[1]
    tm = _pick_tile(n)
    tn = _pick_tile(h)
    grid = (n // tm, h // tn)
    cost = pl.CostEstimate(flops=2 * n * f * h, transcendentals=0,
                           bytes_accessed=n * f * 2 + f * h * 2 + n * h * 2)
    return pl.pallas_call(
        _xw_kernel,
        out_shape=jax.ShapeDtypeStruct((n, h), jnp.bfloat16),
        grid_spec=pltpu.PrefetchScalarGridSpec(
            num_scalar_prefetch=0,
            grid=grid,
            in_specs=[
                pl.BlockSpec((tm, f), lambda i, j: (i, 0)),
                pl.BlockSpec((f, tn), lambda i, j: (0, j)),
            ],
            out_specs=pl.BlockSpec((tm, tn), lambda i, j: (i, j)),
        ),
        compiler_params=pltpu.CompilerParams(
            dimension_semantics=("parallel", "parallel"),
            vmem_limit_bytes=VMEM_LIMIT),
        cost_estimate=cost,
    )(x_bf16, w_rel_bf16)


# ------------- kernel 2: A @ XW  (+ fused root term, bias, ReLU epilogue) -------------

def _aggregate_kernel(adj_ref, xw_ref, x_ref, wroot_ref, b_ref, o_ref, acc_ref,
                      *, apply_relu):
    k = pl.program_id(2)

    @pl.when(k == 0)
    def _():
        acc_ref[...] = jnp.zeros_like(acc_ref)

    # int8 adjacency tile -> bf16 on the (idle) VPU right before the MXU op.
    adj = adj_ref[...].astype(jnp.float32).astype(jnp.bfloat16)
    acc_ref[...] += jnp.dot(adj, xw_ref[...], preferred_element_type=jnp.float32)

    @pl.when(k == pl.num_programs(2) - 1)
    def _():
        # Fused epilogue: X @ W_root + b (+ ReLU); runs once per output tile.
        root = jnp.dot(x_ref[...], wroot_ref[...], preferred_element_type=jnp.float32)
        out = acc_ref[...] + root + b_ref[...]
        if apply_relu:
            out = jnp.maximum(out, 0.0)
        o_ref[...] = out.astype(o_ref.dtype)


def _aggregate(adj_i8, xw_bf16, x_bf16, w_root_bf16, b_f32, *, apply_relu, out_dtype):
    n = adj_i8.shape[0]
    h = xw_bf16.shape[1]
    f = x_bf16.shape[1]
    tm = _pick_tile(n)
    tk = _pick_tile(n)
    tn = _pick_tile(h)
    grid = (n // tm, h // tn, n // tk)
    out_bytes = jnp.dtype(out_dtype).itemsize
    cost = pl.CostEstimate(
        flops=2 * n * n * h + 2 * n * f * h,
        transcendentals=0,
        bytes_accessed=n * n * 1 + n * h * 2 + n * f * 2 + f * h * 2 + h * 4
        + n * h * out_bytes)
    kernel = functools.partial(_aggregate_kernel, apply_relu=apply_relu)
    return pl.pallas_call(
        kernel,
        out_shape=jax.ShapeDtypeStruct((n, h), out_dtype),
        grid_spec=pltpu.PrefetchScalarGridSpec(
            num_scalar_prefetch=0,
            grid=grid,
            in_specs=[
                pl.BlockSpec((tm, tk), lambda i, j, k: (i, k)),
                pl.BlockSpec((tk, tn), lambda i, j, k: (k, j)),
                pl.BlockSpec((tm, f), lambda i, j, k: (i, 0)),
                pl.BlockSpec((f, tn), lambda i, j, k: (0, j)),
                pl.BlockSpec((1, tn), lambda i, j, k: (0, j)),
            ],
            out_specs=pl.BlockSpec((tm, tn), lambda i, j, k: (i, j)),
            scratch_shapes=[pltpu.VMEM((tm, tn), jnp.float32)],
        ),
        compiler_params=pltpu.CompilerParams(
            dimension_semantics=("parallel", "parallel", "arbitrary"),
            vmem_limit_bytes=VMEM_LIMIT),
        cost_estimate=cost,
    )(adj_i8, xw_bf16, x_bf16, w_root_bf16, b_f32.reshape(1, h))


def graph_conv_layer(adj_i8, x_bf16, p, *, apply_relu, out_dtype):
    xw = _node_linear(x_bf16, p["w_rel"])
    return _aggregate(adj_i8, xw, x_bf16, p["w_root"], p["b"],
                      apply_relu=apply_relu, out_dtype=out_dtype)


# ------------------------------ glue (plain JAX) ------------------------------

def build_adjacency(edge_index, num_nodes_pad):
    """Dense A[dst, src] = edge multiplicity (aggr='add'); int8 to halve HBM traffic.
    TODO(synk): edge multiplicities > 127 would overflow int8 (fine for 0/1 multigraphs)."""
    src = edge_index[0]
    dst = edge_index[1]
    a = jnp.zeros((num_nodes_pad, num_nodes_pad), jnp.int32)
    a = a.at[dst, src].add(1)
    return a.astype(jnp.int8)


def init_node_graph_conv(key, num_features, num_classes, hidden_channels, num_layers):
    """Per layer: W_rel (with bias) and W_root (no bias); weights pre-cast to bf16,
    zero-padded to lane-dense widths (bias stays fp32)."""
    hidden_pad = _round_up(hidden_channels, LANE)
    classes_pad = _round_up(num_classes, LANE)
    feat_pad = _round_up(num_features, SUBLANE)

    layer_dims = ([(num_features, hidden_channels)]
                  + [(hidden_channels, hidden_channels)] * max(num_layers - 2, 0)
                  + [(hidden_channels, num_classes)])
    pad_dims = ([(feat_pad, hidden_pad)]
                + [(hidden_pad, hidden_pad)] * max(num_layers - 2, 0)
                + [(hidden_pad, classes_pad)])

    params = []
    for (f_in, f_out), (f_in_p, f_out_p) in zip(layer_dims, pad_dims):
        key, k1, k2, k3 = jax.random.split(key, 4)
        bound = 1.0 / jnp.sqrt(f_in)        # torch.nn.Linear-style uniform init
        w_rel = jax.random.uniform(k1, (f_in, f_out), jnp.float32, -bound, bound)
        w_root = jax.random.uniform(k2, (f_in, f_out), jnp.float32, -bound, bound)
        b_rel = jax.random.uniform(k3, (f_out,), jnp.float32, -bound, bound)
        params.append({
            "w_rel": jnp.zeros((f_in_p, f_out_p), jnp.bfloat16)
                        .at[:f_in, :f_out].set(w_rel.astype(jnp.bfloat16)),
            "w_root": jnp.zeros((f_in_p, f_out_p), jnp.bfloat16)
                        .at[:f_in, :f_out].set(w_root.astype(jnp.bfloat16)),
            "b": jnp.zeros((f_out_p,), jnp.float32).at[:f_out].set(b_rel),
            "in_dim": f_in,
            "out_dim": f_out,
        })
    return params


def node_graph_conv_forward(params, x, edge_index, return_node_emb=False):
    n, f = x.shape
    n_pad = _round_up(n, LANE)
    adj = build_adjacency(edge_index, n_pad)          # int8, built once, reused per layer
    feat_pad = params[0]["w_rel"].shape[0]
    h = jnp.zeros((n_pad, feat_pad), jnp.bfloat16).at[:n, :f].set(x.astype(jnp.bfloat16))
    cur_dim = f

    node_emb = None
    for li, p in enumerate(params):
        is_last = li == len(params) - 1
        if is_last:
            # node_emb = activations right before the final layer (input x if 1 layer).
            node_emb = h[:n, :cur_dim].astype(jnp.float32)
        out_dtype = jnp.float32 if is_last else jnp.bfloat16   # bf16 hidden activations
        h = graph_conv_layer(adj, h, p, apply_relu=not is_last, out_dtype=out_dtype)
        cur_dim = p["out_dim"]

    out = h[:n, :params[-1]["out_dim"]]
    if return_node_emb:
        return out, node_emb
    return out


def _reference_forward(params, x, edge_index):
    """Pure-JAX fp32 reference with identical (padded, bf16-quantized) parameters."""
    n, f = x.shape
    n_pad = _round_up(n, LANE)
    adj = build_adjacency(edge_index, n_pad).astype(jnp.float32)
    feat_pad = params[0]["w_rel"].shape[0]
    h = jnp.zeros((n_pad, feat_pad), jnp.float32).at[:n, :f].set(x)
    for i, p in enumerate(params):
        w_rel = p["w_rel"].astype(jnp.float32)
        w_root = p["w_root"].astype(jnp.float32)
        z = (adj @ h) @ w_rel + h @ w_root + p["b"][None, :]
        if i < len(params) - 1:
            z = jnp.maximum(z, 0.0)
        h = z
    return h[:n, :params[-1]["out_dim"]]


# ------------------------------ demo ------------------------------

if __name__ == "__main__":
    NUM_NODES = 128
    NUM_FEATURES = 16
    HIDDEN = 32
    NUM_CLASSES = 8
    NUM_LAYERS = 3
    NUM_EDGES = 256

    key = jax.random.PRNGKey(0)
    kx, ke1, ke2, kp = jax.random.split(key, 4)

    x = jax.random.normal(kx, (NUM_NODES, NUM_FEATURES), jnp.float32)
    edge_index = jnp.stack([
        jax.random.randint(ke1, (NUM_EDGES,), 0, NUM_NODES),
        jax.random.randint(ke2, (NUM_EDGES,), 0, NUM_NODES),
    ]).astype(jnp.int32)

    params = init_node_graph_conv(kp, NUM_FEATURES, NUM_CLASSES, HIDDEN, NUM_LAYERS)

    out, node_emb = node_graph_conv_forward(params, x, edge_index, return_node_emb=True)
    out = jax.block_until_ready(out)
    assert out.shape == (NUM_NODES, NUM_CLASSES), out.shape
    assert node_emb.shape == (NUM_NODES, HIDDEN), node_emb.shape

    # Loose check vs. fp32 reference (bf16 MXU operands / bf16 hidden activations).
    ref = _reference_forward(params, x, edge_index)
    scale = jnp.max(jnp.abs(ref)) + 1.0
    err = jnp.max(jnp.abs(out - ref)) / scale
    assert float(err) < 5e-2, float(err)

    print("KERNEL_OK")
</pallas_src>

<mosaic_0001>
module attributes {stable_mosaic.version = 11 : i64} {
  func.func @_xw_kernel(%arg0: i32, %arg1: i32, %arg2: memref<128x16xbf16, #tpu.memory_space<vmem>>, %arg3: memref<16x128xbf16, #tpu.memory_space<vmem>>, %arg4: memref<128x128xbf16, #tpu.memory_space<vmem>>) attributes {dimension_semantics = [#tpu.dimension_semantics<parallel>, #tpu.dimension_semantics<parallel>], iteration_bounds = array<i64: 1, 1>, scalar_prefetch = 0 : i64, scratch_operands = 0 : i64, tpu.core_type = #tpu.core_type<tc>, window_params = [{transform_indices = @transform_0, window_bounds = array<i64: 128, 16>}, {transform_indices = @transform_1, window_bounds = array<i64: 16, 128>}, {transform_indices = @transform_2, window_bounds = array<i64: 128, 128>}]} {
    %c0 = arith.constant 0 : index
    %c0_0 = arith.constant 0 : index
    %0 = vector.load %arg2[%c0, %c0_0] : memref<128x16xbf16, #tpu.memory_space<vmem>>, vector<128x16xbf16>
    %c0_1 = arith.constant 0 : index
    %c0_2 = arith.constant 0 : index
    %1 = vector.load %arg3[%c0_1, %c0_2] : memref<16x128xbf16, #tpu.memory_space<vmem>>, vector<16x128xbf16>
    %cst = arith.constant dense<0.000000e+00> : vector<128x128xf32>
    %2 = tpu.matmul %0, %1, %cst {dimension_numbers = #tpu.dot_dimension_numbers<[1], [0], [0], [1], [0, 0, 1, 1], [], []>} : vector<128x16xbf16>, vector<16x128xbf16>, vector<128x128xf32> -> vector<128x128xf32>
    %3 = arith.truncf %2 : vector<128x128xf32> to vector<128x128xbf16>
    %c0_3 = arith.constant 0 : index
    %c0_4 = arith.constant 0 : index
    %4 = vector.load %arg4[%c0_3, %c0_4] : memref<128x128xbf16, #tpu.memory_space<vmem>>, vector<128x128xbf16>
    tpu.vector_store %arg4[%c0_3, %c0_4], %3 {strides = array<i32>} : memref<128x128xbf16, #tpu.memory_space<vmem>>, vector<128x128xbf16>,
    return
  }
  func.func @transform_0(%arg0: i32, %arg1: i32) -> (i32, i32) {
    %c0_i32 = arith.constant 0 : i32
    %c0_i32_0 = arith.constant 0 : i32
    return %arg0, %c0_i32 : i32, i32
  }
  func.func @transform_1(%arg0: i32, %arg1: i32) -> (i32, i32) {
    %c0_i32 = arith.constant 0 : i32
    %c0_i32_0 = arith.constant 0 : i32
    return %c0_i32, %arg1 : i32, i32
  }
  func.func @transform_2(%arg0: i32, %arg1: i32) -> (i32, i32) {
    %c0_i32 = arith.constant 0 : i32
    return %arg0, %arg1 : i32, i32
  }
}

</mosaic_0001>

<llo_original>
// kernel: tpu_custom_call.1
$region0: #{tpu_custom_call.1}
  #allocation0 [shape = 'u32[]', space=smem, size = 0x4, offset = 0x4, fixed_abs, tag = 'smem constant byte address 0x4 - core index']
  #allocation1 [shape = 'u32[144,128]{1,0:T(1,128)}', space=vmem, size = 0x12000, scoped, tag = 'internal scratch']
  %s0 = inlined_call_operand.vmem [shape: bf16[128,16], index: 0, kind: input, shape index: {}]
  %s1 = inlined_call_operand.vmem [shape: bf16[16,128], index: 1, kind: input, shape index: {}]
  %s2 = inlined_call_operand.hbm [shape: bf16[128,128], index: 2, kind: output, shape index: {}]
  %s3 = sld [smem:[#allocation0]]
  $region18: #{tpu_custom_call.1} parent=0
    _
  %s5 = ssub.s32 1, %s3
  %s6 = scalar_select 0, %s5, %s3
  $region1: #{tpu_custom_call.1} parent=0
    #allocation2 [shape = 'u8[32768]{0}', space=vmem, size = 0x8000, scoped, tag = 'output window, operand 0, single buffered']
    #allocation3 [shape = 's32[1]{0}', space=sflag, size = 0x4, scoped, tag = 'scoped memory for tpu_custom_call.1']
    %7 = vsyncpa [#allocation3], 0
    // Predicated region
    $region2: #{tpu_custom_call.1} parent=1 // pred_check
      _
    $region3: #{tpu_custom_call.1} parent=1 // pred_check_branch
      %9 = sbr.rel (0) target = $region5
    $region4: #{tpu_custom_call.1} parent=1 // pred_region
      _
    $region5: #{tpu_custom_call.1} parent=1 // pred_fallthru
      _
    // Predicated region
    $region6: #{tpu_custom_call.1} parent=1 // pred_check
      _
    $region7: #{tpu_custom_call.1} parent=1 // pred_check_branch
      %11 = sbr.rel (0) target = $region9
    $region8: #{tpu_custom_call.1} parent=1 // pred_region
      _
    $region9: #{tpu_custom_call.1} parent=1 // pred_fallthru
      _
    %v13 = vld [vmem:[%s0] sm:$0xf]
    %v14 = vld [vmem:[%s0 + $0x4] sm:$0xf]
    %v15 = vld [vmem:[%s0 + $0x8] sm:$0xf]
    %v16 = vld [vmem:[%s0 + $0xc] sm:$0xf]
    %v17 = vld [vmem:[%s0 + $0x10] sm:$0xf]
    %v18 = vld [vmem:[%s0 + $0x14] sm:$0xf]
    %v19 = vld [vmem:[%s0 + $0x18] sm:$0xf]
    %v20 = vld [vmem:[%s0 + $0x1c] sm:$0xf]
    %v21 = vld [vmem:[%s0 + $0x20] sm:$0xf]
    %v22 = vld [vmem:[%s0 + $0x24] sm:$0xf]
    %v23 = vld [vmem:[%s0 + $0x28] sm:$0xf]
    %v24 = vld [vmem:[%s0 + $0x2c] sm:$0xf]
    %v25 = vld [vmem:[%s0 + $0x30] sm:$0xf]
    %v26 = vld [vmem:[%s0 + $0x34] sm:$0xf]
    %v27 = vld [vmem:[%s0 + $0x38] sm:$0xf]
    %v28 = vld [vmem:[%s0 + $0x3c] sm:$0xf]
    %v29 = vld [vmem:[%s1] sm:$0xf]
    %v30 = vld [vmem:[%s1 + $0x4] sm:$0xf]
    %v47 = vunpack.c.l.b16 %v13
    %v48 = vunpack.c.l.b16 %v14
    %v49 = vunpack.c.l.b16 %v15
    %v50 = vunpack.c.l.b16 %v16
    %v51 = vunpack.c.l.b16 %v17
    %v52 = vunpack.c.l.b16 %v18
    %v53 = vunpack.c.l.b16 %v19
    %v54 = vunpack.c.l.b16 %v20
    %v55 = vunpack.c.l.b16 %v21
    %v56 = vunpack.c.l.b16 %v22
    %v57 = vunpack.c.l.b16 %v23
    %v58 = vunpack.c.l.b16 %v24
    %v59 = vunpack.c.l.b16 %v25
    %v60 = vunpack.c.l.b16 %v26
    %v61 = vunpack.c.l.b16 %v27
    %v62 = vunpack.c.l.b16 %v28
    %v63 = vpack.c.b16 %v48, %v47
    %v64 = vpack.c.b16 %v50, %v49
    %v65 = vpack.c.b16 %v52, %v51
    %v66 = vpack.c.b16 %v54, %v53
    %v67 = vpack.c.b16 %v56, %v55
    %v68 = vpack.c.b16 %v58, %v57
    %v69 = vpack.c.b16 %v60, %v59
    %v70 = vpack.c.b16 %v62, %v61
    %v73 = vunpack.c.l.b16 %v29
    %v74 = vunpack.c.l.b16 %v30
    %v75 = vpack.c.b16 %v74, %v73
    %vm77 = vcmask 130048
    %v79 = vsel %vm77, %v63, 0
    %v82 = vsel %vm77, %v64, 0
    %v85 = vsel %vm77, %v65, 0
    %v88 = vsel %vm77, %v66, 0
    %v91 = vsel %vm77, %v67, 0
    %v94 = vsel %vm77, %v68, 0
    %v97 = vsel %vm77, %v69, 0
    %v100 = vsel %vm77, %v70, 0
    %102 = vmatprep.subr.bf16.mxu0 0
    %103 = vmatpush1.bf16.msra.mxu0 %v75
    %104 = vmatprep.subr.bf16.mxu0 0
    %105 = vmatpush1.bf16.msra.mxu0 0
    %106 = vmatprep.subr.bf16.mxu0 0
    %107 = vmatpush1.bf16.msra.mxu0 0
    %108 = vmatprep.subr.bf16.mxu0 0
    %109 = vmatpush1.bf16.msra.mxu0 0
    %110 = vmatprep.subr.bf16.mxu0 0
    %111 = vmatpush1.bf16.msra.mxu0 0
    %112 = vmatprep.subr.bf16.mxu0 0
    %113 = vmatpush1.bf16.msra.mxu0 0
    %114 = vmatprep.subr.bf16.mxu0 0
    %115 = vmatpush1.bf16.msra.mxu0 0
    %116 = vmatprep.subr.bf16.mxu0 0
    %117 = vmatpush1.bf16.msra.mxu0 0
    %118 = vmatprep.subr.bf16.mxu0 0
    %119 = vmatpush1.bf16.msra.mxu0 0
    %120 = vmatprep.subr.bf16.mxu0 0
    %121 = vmatpush1.bf16.msra.mxu0 0
    %122 = vmatprep.subr.bf16.mxu0 0
    %123 = vmatpush1.bf16.msra.mxu0 0
    %124 = vmatprep.subr.bf16.mxu0 0
    %125 = vmatpush1.bf16.msra.mxu0 0
    %126 = vmatprep.subr.bf16.mxu0 0
    %127 = vmatpush1.bf16.msra.mxu0 0
    %128 = vmatprep.subr.bf16.mxu0 0
    %129 = vmatpush1.bf16.msra.mxu0 0
    %130 = vmatprep.subr.bf16.mxu0 0
    %131 = vmatpush1.bf16.msra.mxu0 0
    %132 = vmatprep.subr.bf16.mxu0 0
    %133 = vmatpush1.bf16.msra.mxu0 0
    %134 = vmatprep.mubr.bf16.mxu0 0
    %135 = vmatmul.mubr.bf16.gmra.mrb[0].mxu0 %v79
    %v136 = vpop.f32.mrb[0].mxu0
    %v137 = vadd.f32 0.0, %v136
    %v138 = vpop.f32.mrb[0].mxu0
    %v139 = vpop.f32.mrb[0].mxu0
    %v140 = vadd.f32 0.0, %v139
    %v141 = vpop.f32.mrb[0].mxu0
    %142 = vmatprep.mubr.bf16.mxu0 0
    %143 = vmatmul.mubr.bf16.gmra.mrb[0].mxu0 %v82
    %v144 = vpop.f32.mrb[0].mxu0
    %v145 = vadd.f32 0.0, %v144
    %v146 = vpop.f32.mrb[0].mxu0
    %v147 = vpop.f32.mrb[0].mxu0
    %v148 = vadd.f32 0.0, %v147
    %v149 = vpop.f32.mrb[0].mxu0
    %150 = vmatprep.mubr.bf16.mxu0 0
    %151 = vmatmul.mubr.bf16.gmra.mrb[0].mxu0 %v85
    %v152 = vpop.f32.mrb[0].mxu0
    %v153 = vadd.f32 0.0, %v152
    %v154 = vpop.f32.mrb[0].mxu0
    %v155 = vpop.f32.mrb[0].mxu0
    %v156 = vadd.f32 0.0, %v155
    %v157 = vpop.f32.mrb[0].mxu0
    %158 = vmatprep.mubr.bf16.mxu0 0
    %159 = vmatmul.mubr.bf16.gmra.mrb[0].mxu0 %v88
    %v160 = vpop.f32.mrb[0].mxu0
    %v161 = vadd.f32 0.0, %v160
    %v162 = vpop.f32.mrb[0].mxu0
    %v163 = vpop.f32.mrb[0].mxu0
    %v164 = vadd.f32 0.0, %v163
    %v165 = vpop.f32.mrb[0].mxu0
    %166 = vmatprep.mubr.bf16.mxu0 0
    %167 = vmatmul.mubr.bf16.gmra.mrb[0].mxu0 %v91
    %v168 = vpop.f32.mrb[0].mxu0
    %v169 = vadd.f32 0.0, %v168
    %v170 = vpop.f32.mrb[0].mxu0
    %v171 = vpop.f32.mrb[0].mxu0
    %v172 = vadd.f32 0.0, %v171
    %v173 = vpop.f32.mrb[0].mxu0
    %174 = vmatprep.mubr.bf16.mxu0 0
    %175 = vmatmul.mubr.bf16.gmra.mrb[0].mxu0 %v94
    %v176 = vpop.f32.mrb[0].mxu0
    %v177 = vadd.f32 0.0, %v176
    %v178 = vpop.f32.mrb[0].mxu0
    %v179 = vpop.f32.mrb[0].mxu0
    %v180 = vadd.f32 0.0, %v179
    %v181 = vpop.f32.mrb[0].mxu0
    %182 = vmatprep.mubr.bf16.mxu0 0
    %183 = vmatmul.mubr.bf16.gmra.mrb[0].mxu0 %v97
    %v184 = vpop.f32.mrb[0].mxu0
    %v185 = vadd.f32 0.0, %v184
    %v186 = vpop.f32.mrb[0].mxu0
    %v187 = vpop.f32.mrb[0].mxu0
    %v188 = vadd.f32 0.0, %v187
    %v189 = vpop.f32.mrb[0].mxu0
    %190 = vmatprep.mubr.bf16.mxu0 0
    %191 = vmatmul.mubr.bf16.gmra.mrb[0].mxu0 %v100
    %v192 = vpop.f32.mrb[0].mxu0
    %v193 = vadd.f32 0.0, %v192
    %v194 = vpop.f32.mrb[0].mxu0
    %v195 = vpop.f32.mrb[0].mxu0
    %v196 = vadd.f32 0.0, %v195
    %v197 = vpop.f32.mrb[0].mxu0
    %198 = vdwg.mxu0
    %v199 = vpack.c.bf16 %v140, %v137
    %v200 = vpack.c.bf16 %v148, %v145
    %v201 = vpack.c.bf16 %v156, %v153
    %v202 = vpack.c.bf16 %v164, %v161
    %v203 = vpack.c.bf16 %v172, %v169
    %v204 = vpack.c.bf16 %v180, %v177
    %v205 = vpack.c.bf16 %v188, %v185
    %v206 = vpack.c.bf16 %v196, %v193
    %v215 = vunpack.c.l.b16 %v199
    %v216 = vunpack.c.h.b16 %v199
    %v217 = vunpack.c.l.b16 %v200
    %v218 = vunpack.c.h.b16 %v200
    %v219 = vunpack.c.l.b16 %v201
    %v220 = vunpack.c.h.b16 %v201
    %v221 = vunpack.c.l.b16 %v202
    %v222 = vunpack.c.h.b16 %v202
    %v223 = vunpack.c.l.b16 %v203
    %v224 = vunpack.c.h.b16 %v203
    %v225 = vunpack.c.l.b16 %v204
    %v226 = vunpack.c.h.b16 %v204
    %v227 = vunpack.c.l.b16 %v205
    %v228 = vunpack.c.h.b16 %v205
    %v229 = vunpack.c.l.b16 %v206
    %v230 = vunpack.c.h.b16 %v206
    %v231 = vpack.c.b16 %v215, %v215
    %v232 = vpack.c.b16 %v216, %v216
    %v233 = vpack.c.b16 %v217, %v217
    %v234 = vpack.c.b16 %v218, %v218
    %v235 = vpack.c.b16 %v219, %v219
    %v236 = vpack.c.b16 %v220, %v220
    %v237 = vpack.c.b16 %v221, %v221
    %v238 = vpack.c.b16 %v222, %v222
    %v239 = vpack.c.b16 %v223, %v223
    %v240 = vpack.c.b16 %v224, %v224
    %v241 = vpack.c.b16 %v225, %v225
    %v242 = vpack.c.b16 %v226, %v226
    %v243 = vpack.c.b16 %v227, %v227
    %v244 = vpack.c.b16 %v228, %v228
    %v245 = vpack.c.b16 %v229, %v229
    %v246 = vpack.c.b16 %v230, %v230
    %263 = vst [vmem:[#allocation2] sm:$0xf] %v231
    %264 = vst [vmem:[#allocation2 + $0x4] sm:$0xf] %v232
    %265 = vst [vmem:[#allocation2 + $0x8] sm:$0xf] %v233
    %266 = vst [vmem:[#allocation2 + $0xc] sm:$0xf] %v234
    %267 = vst [vmem:[#allocation2 + $0x10] sm:$0xf] %v235
    %268 = vst [vmem:[#allocation2 + $0x14] sm:$0xf] %v236
    %269 = vst [vmem:[#allocation2 + $0x18] sm:$0xf] %v237
    %270 = vst [vmem:[#allocation2 + $0x1c] sm:$0xf] %v238
    %271 = vst [vmem:[#allocation2 + $0x20] sm:$0xf] %v239
    %272 = vst [vmem:[#allocation2 + $0x24] sm:$0xf] %v240
    %273 = vst [vmem:[#allocation2 + $0x28] sm:$0xf] %v241
    %274 = vst [vmem:[#allocation2 + $0x2c] sm:$0xf] %v242
    %275 = vst [vmem:[#allocation2 + $0x30] sm:$0xf] %v243
    %276 = vst [vmem:[#allocation2 + $0x34] sm:$0xf] %v244
    %277 = vst [vmem:[#allocation2 + $0x38] sm:$0xf] %v245
    %278 = vst [vmem:[#allocation2 + $0x3c] sm:$0xf] %v246
    // Predicated region
    $region10: #{tpu_custom_call.1} parent=1 // pred_check
      _
    $region11: #{tpu_custom_call.1} parent=1 // pred_check_branch
      %280 = sbr.rel (0) target = $region13
    $region12: #{tpu_custom_call.1} parent=1 // pred_region
      %s282 = ssub.s32 1024, 1024
      %283 = vsyncadd [#allocation3], %s282
      %s284 = sshll.u32 [#allocation2], 4
      %s285 = int_to_ptr.vmem [resolvable:$true] %s284
      %290 = dma.vmem_to_hbm [thread:$0]  %s285, 1024, %s2, [#allocation3], 64, 64, 4
    $region13: #{tpu_custom_call.1} parent=1 // pred_fallthru
      _
    // Predicated region
    $region14: #{tpu_custom_call.1} parent=1 // pred_check
      _
    $region15: #{tpu_custom_call.1} parent=1 // pred_check_branch
      %292 = sbr.rel (0) target = $region17
    $region16: #{tpu_custom_call.1} parent=1 // pred_region
      %293 = dma.done [#allocation3], 1024
    $region17: #{tpu_custom_call.1} parent=1 // pred_fallthru
      _
    %294 = vsyncpa [#allocation3], 1

</llo_original>
